<compile_context>
chip_gen: v7x
topology: tpu7x:2x2x1
jax: 0.10.0
libtpu: 0.0.40
codegen_flags: <defaults>
</compile_context>

<pallas_src>
import jax
import jax.numpy as jnp
from jax.experimental import pallas as pl
from jax.experimental.pallas import tpu as pltpu

N_ITERS = 64
LANE = 128


def _sigmoid_loop_kernel(x_ref, o_ref):
    v = x_ref[...].astype(jnp.float32)
    # Fully unrolled: 64-deep serial chain with exactly one EUP op (tanh) per
    # iteration; the 0.5*v mul and 0.5*t + 0.5 FMA co-issue in VALU slots.
    for _ in range(N_ITERS):
        v = 0.5 * jnp.tanh(0.5 * v) + 0.5
    o_ref[...] = v.astype(o_ref.dtype)


def _run_slab(slab):
    """Single gridless pallas_call on a lane-dense 2D slab (rows % 8 == 0, cols == 128)."""
    rows = slab.shape[0]
    n_elems = rows * LANE
    return pl.pallas_call(
        _sigmoid_loop_kernel,
        out_shape=jax.ShapeDtypeStruct(slab.shape, slab.dtype),
        in_specs=[pl.BlockSpec(memory_space=pltpu.MemorySpace.VMEM)],
        out_specs=pl.BlockSpec(memory_space=pltpu.MemorySpace.VMEM),
        input_output_aliases={0: 0},
        cost_estimate=pl.CostEstimate(
            flops=4 * N_ITERS * n_elems,
            transcendentals=N_ITERS * n_elems,
            bytes_accessed=2 * n_elems * slab.dtype.itemsize,
        ),
    )(slab)


@jax.jit
def repeated_sigmoid(x):
    """Apply sigmoid 64 times, matching the PyTorch loop exactly."""
    orig_shape = x.shape
    total = x.size

    if total % LANE == 0 and (total // LANE) % 8 == 0:
        # Fast path: static reshape in/out, no pad, no slice.
        # (2,4,16,16) f32 -> 2048 elems = (16,128) lane-dense slab.
        rows = total // LANE
        out_slab = _run_slab(x.reshape(rows, LANE))
        return out_slab.reshape(orig_shape)

    # Fallback for shapes that don't tile cleanly into (8k, 128): pad then slice off.
    rows = pl.cdiv(total, LANE)
    rows_padded = ((rows + 7) // 8) * 8
    padded_total = rows_padded * LANE
    flat = jnp.pad(jnp.ravel(x), (0, padded_total - total))
    out_slab = _run_slab(flat.reshape(rows_padded, LANE))
    return out_slab.reshape(-1)[:total].reshape(orig_shape)


def reference(x):
    y = x
    for _ in range(N_ITERS):
        y = jax.nn.sigmoid(y)
    return y


if __name__ == "__main__":
    key = jax.random.PRNGKey(0)
    x = jax.random.normal(key, (2, 4, 16, 16), dtype=jnp.float32)

    out = repeated_sigmoid(x)
    jax.block_until_ready(out)

    ref = reference(x)
    assert out.shape == x.shape and out.dtype == x.dtype
    # Sigmoid is contractive (|sigmoid'| <= 0.25); the tanh-identity form stays
    # within a few f32 ULPs of the exp form even after 64 compositions.
    assert jnp.allclose(out, ref, atol=1e-6, rtol=1e-6)

    print("KERNEL_OK")
</pallas_src>

<mosaic_0001>
module attributes {stable_mosaic.version = 11 : i64} {
  func.func @_sigmoid_loop_kernel(%arg0: memref<16x128xf32, #tpu.memory_space<vmem>>, %arg1: memref<16x128xf32, #tpu.memory_space<vmem>>) attributes {dimension_semantics = [], scalar_prefetch = 0 : i64, scratch_operands = 0 : i64, tpu.core_type = #tpu.core_type<tc>} {
    %c0 = arith.constant 0 : index
    %c0_0 = arith.constant 0 : index
    %0 = vector.load %arg0[%c0, %c0_0] : memref<16x128xf32, #tpu.memory_space<vmem>>, vector<16x128xf32>
    %cst = arith.constant 5.000000e-01 : f32
    %1 = vector.broadcast %cst : f32 to vector<16x128xf32>
    %2 = arith.mulf %1, %0 : vector<16x128xf32>
    %3 = math.tanh %2 : vector<16x128xf32>
    %cst_1 = arith.constant 5.000000e-01 : f32
    %4 = vector.broadcast %cst_1 : f32 to vector<16x128xf32>
    %5 = arith.mulf %4, %3 : vector<16x128xf32>
    %cst_2 = arith.constant 5.000000e-01 : f32
    %6 = vector.broadcast %cst_2 : f32 to vector<16x128xf32>
    %7 = arith.addf %5, %6 : vector<16x128xf32>
    %cst_3 = arith.constant 5.000000e-01 : f32
    %8 = vector.broadcast %cst_3 : f32 to vector<16x128xf32>
    %9 = arith.mulf %8, %7 : vector<16x128xf32>
    %10 = math.tanh %9 : vector<16x128xf32>
    %cst_4 = arith.constant 5.000000e-01 : f32
    %11 = vector.broadcast %cst_4 : f32 to vector<16x128xf32>
    %12 = arith.mulf %11, %10 : vector<16x128xf32>
    %cst_5 = arith.constant 5.000000e-01 : f32
    %13 = vector.broadcast %cst_5 : f32 to vector<16x128xf32>
    %14 = arith.addf %12, %13 : vector<16x128xf32>
    %cst_6 = arith.constant 5.000000e-01 : f32
    %15 = vector.broadcast %cst_6 : f32 to vector<16x128xf32>
    %16 = arith.mulf %15, %14 : vector<16x128xf32>
    %17 = math.tanh %16 : vector<16x128xf32>
    %cst_7 = arith.constant 5.000000e-01 : f32
    %18 = vector.broadcast %cst_7 : f32 to vector<16x128xf32>
    %19 = arith.mulf %18, %17 : vector<16x128xf32>
    %cst_8 = arith.constant 5.000000e-01 : f32
    %20 = vector.broadcast %cst_8 : f32 to vector<16x128xf32>
    %21 = arith.addf %19, %20 : vector<16x128xf32>
    %cst_9 = arith.constant 5.000000e-01 : f32
    %22 = vector.broadcast %cst_9 : f32 to vector<16x128xf32>
    %23 = arith.mulf %22, %21 : vector<16x128xf32>
    %24 = math.tanh %23 : vector<16x128xf32>
    %cst_10 = arith.constant 5.000000e-01 : f32
    %25 = vector.broadcast %cst_10 : f32 to vector<16x128xf32>
    %26 = arith.mulf %25, %24 : vector<16x128xf32>
    %cst_11 = arith.constant 5.000000e-01 : f32
    %27 = vector.broadcast %cst_11 : f32 to vector<16x128xf32>
    %28 = arith.addf %26, %27 : vector<16x128xf32>
    %cst_12 = arith.constant 5.000000e-01 : f32
    %29 = vector.broadcast %cst_12 : f32 to vector<16x128xf32>
    %30 = arith.mulf %29, %28 : vector<16x128xf32>
    %31 = math.tanh %30 : vector<16x128xf32>
    %cst_13 = arith.constant 5.000000e-01 : f32
    %32 = vector.broadcast %cst_13 : f32 to vector<16x128xf32>
    %33 = arith.mulf %32, %31 : vector<16x128xf32>
    %cst_14 = arith.constant 5.000000e-01 : f32
    %34 = vector.broadcast %cst_14 : f32 to vector<16x128xf32>
    %35 = arith.addf %33, %34 : vector<16x128xf32>
    %cst_15 = arith.constant 5.000000e-01 : f32
    %36 = vector.broadcast %cst_15 : f32 to vector<16x128xf32>
    %37 = arith.mulf %36, %35 : vector<16x128xf32>
    %38 = math.tanh %37 : vector<16x128xf32>
    %cst_16 = arith.constant 5.000000e-01 : f32
    %39 = vector.broadcast %cst_16 : f32 to vector<16x128xf32>
    %40 = arith.mulf %39, %38 : vector<16x128xf32>
    %cst_17 = arith.constant 5.000000e-01 : f32
    %41 = vector.broadcast %cst_17 : f32 to vector<16x128xf32>
    %42 = arith.addf %40, %41 : vector<16x128xf32>
    %cst_18 = arith.constant 5.000000e-01 : f32
    %43 = vector.broadcast %cst_18 : f32 to vector<16x128xf32>
    %44 = arith.mulf %43, %42 : vector<16x128xf32>
    %45 = math.tanh %44 : vector<16x128xf32>
    %cst_19 = arith.constant 5.000000e-01 : f32
    %46 = vector.broadcast %cst_19 : f32 to vector<16x128xf32>
    %47 = arith.mulf %46, %45 : vector<16x128xf32>
    %cst_20 = arith.constant 5.000000e-01 : f32
    %48 = vector.broadcast %cst_20 : f32 to vector<16x128xf32>
    %49 = arith.addf %47, %48 : vector<16x128xf32>
    %cst_21 = arith.constant 5.000000e-01 : f32
    %50 = vector.broadcast %cst_21 : f32 to vector<16x128xf32>
    %51 = arith.mulf %50, %49 : vector<16x128xf32>
    %52 = math.tanh %51 : vector<16x128xf32>
    %cst_22 = arith.constant 5.000000e-01 : f32
    %53 = vector.broadcast %cst_22 : f32 to vector<16x128xf32>
    %54 = arith.mulf %53, %52 : vector<16x128xf32>
    %cst_23 = arith.constant 5.000000e-01 : f32
    %55 = vector.broadcast %cst_23 : f32 to vector<16x128xf32>
    %56 = arith.addf %54, %55 : vector<16x128xf32>
    %cst_24 = arith.constant 5.000000e-01 : f32
    %57 = vector.broadcast %cst_24 : f32 to vector<16x128xf32>
    %58 = arith.mulf %57, %56 : vector<16x128xf32>
    %59 = math.tanh %58 : vector<16x128xf32>
    %cst_25 = arith.constant 5.000000e-01 : f32
    %60 = vector.broadcast %cst_25 : f32 to vector<16x128xf32>
    %61 = arith.mulf %60, %59 : vector<16x128xf32>
    %cst_26 = arith.constant 5.000000e-01 : f32
    %62 = vector.broadcast %cst_26 : f32 to vector<16x128xf32>
    %63 = arith.addf %61, %62 : vector<16x128xf32>
    %cst_27 = arith.constant 5.000000e-01 : f32
    %64 = vector.broadcast %cst_27 : f32 to vector<16x128xf32>
    %65 = arith.mulf %64, %63 : vector<16x128xf32>
    %66 = math.tanh %65 : vector<16x128xf32>
    %cst_28 = arith.constant 5.000000e-01 : f32
    %67 = vector.broadcast %cst_28 : f32 to vector<16x128xf32>
    %68 = arith.mulf %67, %66 : vector<16x128xf32>
    %cst_29 = arith.constant 5.000000e-01 : f32
    %69 = vector.broadcast %cst_29 : f32 to vector<16x128xf32>
    %70 = arith.addf %68, %69 : vector<16x128xf32>
    %cst_30 = arith.constant 5.000000e-01 : f32
    %71 = vector.broadcast %cst_30 : f32 to vector<16x128xf32>
    %72 = arith.mulf %71, %70 : vector<16x128xf32>
    %73 = math.tanh %72 : vector<16x128xf32>
    %cst_31 = arith.constant 5.000000e-01 : f32
    %74 = vector.broadcast %cst_31 : f32 to vector<16x128xf32>
    %75 = arith.mulf %74, %73 : vector<16x128xf32>
    %cst_32 = arith.constant 5.000000e-01 : f32
    %76 = vector.broadcast %cst_32 : f32 to vector<16x128xf32>
    %77 = arith.addf %75, %76 : vector<16x128xf32>
    %cst_33 = arith.constant 5.000000e-01 : f32
    %78 = vector.broadcast %cst_33 : f32 to vector<16x128xf32>
    %79 = arith.mulf %78, %77 : vector<16x128xf32>
    %80 = math.tanh %79 : vector<16x128xf32>
    %cst_34 = arith.constant 5.000000e-01 : f32
    %81 = vector.broadcast %cst_34 : f32 to vector<16x128xf32>
    %82 = arith.mulf %81, %80 : vector<16x128xf32>
    %cst_35 = arith.constant 5.000000e-01 : f32
    %83 = vector.broadcast %cst_35 : f32 to vector<16x128xf32>
    %84 = arith.addf %82, %83 : vector<16x128xf32>
    %cst_36 = arith.constant 5.000000e-01 : f32
    %85 = vector.broadcast %cst_36 : f32 to vector<16x128xf32>
    %86 = arith.mulf %85, %84 : vector<16x128xf32>
    %87 = math.tanh %86 : vector<16x128xf32>
    %cst_37 = arith.constant 5.000000e-01 : f32
    %88 = vector.broadcast %cst_37 : f32 to vector<16x128xf32>
    %89 = arith.mulf %88, %87 : vector<16x128xf32>
    %cst_38 = arith.constant 5.000000e-01 : f32
    %90 = vector.broadcast %cst_38 : f32 to vector<16x128xf32>
    %91 = arith.addf %89, %90 : vector<16x128xf32>
    %cst_39 = arith.constant 5.000000e-01 : f32
    %92 = vector.broadcast %cst_39 : f32 to vector<16x128xf32>
    %93 = arith.mulf %92, %91 : vector<16x128xf32>
    %94 = math.tanh %93 : vector<16x128xf32>
    %cst_40 = arith.constant 5.000000e-01 : f32
    %95 = vector.broadcast %cst_40 : f32 to vector<16x128xf32>
    %96 = arith.mulf %95, %94 : vector<16x128xf32>
    %cst_41 = arith.constant 5.000000e-01 : f32
    %97 = vector.broadcast %cst_41 : f32 to vector<16x128xf32>
    %98 = arith.addf %96, %97 : vector<16x128xf32>
    %cst_42 = arith.constant 5.000000e-01 : f32
    %99 = vector.broadcast %cst_42 : f32 to vector<16x128xf32>
    %100 = arith.mulf %99, %98 : vector<16x128xf32>
    %101 = math.tanh %100 : vector<16x128xf32>
    %cst_43 = arith.constant 5.000000e-01 : f32
    %102 = vector.broadcast %cst_43 : f32 to vector<16x128xf32>
    %103 = arith.mulf %102, %101 : vector<16x128xf32>
    %cst_44 = arith.constant 5.000000e-01 : f32
    %104 = vector.broadcast %cst_44 : f32 to vector<16x128xf32>
    %105 = arith.addf %103, %104 : vector<16x128xf32>
    %cst_45 = arith.constant 5.000000e-01 : f32
    %106 = vector.broadcast %cst_45 : f32 to vector<16x128xf32>
    %107 = arith.mulf %106, %105 : vector<16x128xf32>
    %108 = math.tanh %107 : vector<16x128xf32>
    %cst_46 = arith.constant 5.000000e-01 : f32
    %109 = vector.broadcast %cst_46 : f32 to vector<16x128xf32>
    %110 = arith.mulf %109, %108 : vector<16x128xf32>
    %cst_47 = arith.constant 5.000000e-01 : f32
    %111 = vector.broadcast %cst_47 : f32 to vector<16x128xf32>
    %112 = arith.addf %110, %111 : vector<16x128xf32>
    %cst_48 = arith.constant 5.000000e-01 : f32
    %113 = vector.broadcast %cst_48 : f32 to vector<16x128xf32>
    %114 = arith.mulf %113, %112 : vector<16x128xf32>
    %115 = math.tanh %114 : vector<16x128xf32>
    %cst_49 = arith.constant 5.000000e-01 : f32
    %116 = vector.broadcast %cst_49 : f32 to vector<16x128xf32>
    %117 = arith.mulf %116, %115 : vector<16x128xf32>
    %cst_50 = arith.constant 5.000000e-01 : f32
    %118 = vector.broadcast %cst_50 : f32 to vector<16x128xf32>
    %119 = arith.addf %117, %118 : vector<16x128xf32>
    %cst_51 = arith.constant 5.000000e-01 : f32
    %120 = vector.broadcast %cst_51 : f32 to vector<16x128xf32>
    %121 = arith.mulf %120, %119 : vector<16x128xf32>
    %122 = math.tanh %121 : vector<16x128xf32>
    %cst_52 = arith.constant 5.000000e-01 : f32
    %123 = vector.broadcast %cst_52 : f32 to vector<16x128xf32>
    %124 = arith.mulf %123, %122 : vector<16x128xf32>
    %cst_53 = arith.constant 5.000000e-01 : f32
    %125 = vector.broadcast %cst_53 : f32 to vector<16x128xf32>
    %126 = arith.addf %124, %125 : vector<16x128xf32>
    %cst_54 = arith.constant 5.000000e-01 : f32
    %127 = vector.broadcast %cst_54 : f32 to vector<16x128xf32>
    %128 = arith.mulf %127, %126 : vector<16x128xf32>
    %129 = math.tanh %128 : vector<16x128xf32>
    %cst_55 = arith.constant 5.000000e-01 : f32
    %130 = vector.broadcast %cst_55 : f32 to vector<16x128xf32>
    %131 = arith.mulf %130, %129 : vector<16x128xf32>
    %cst_56 = arith.constant 5.000000e-01 : f32
    %132 = vector.broadcast %cst_56 : f32 to vector<16x128xf32>
    %133 = arith.addf %131, %132 : vector<16x128xf32>
    %cst_57 = arith.constant 5.000000e-01 : f32
    %134 = vector.broadcast %cst_57 : f32 to vector<16x128xf32>
    %135 = arith.mulf %134, %133 : vector<16x128xf32>
    %136 = math.tanh %135 : vector<16x128xf32>
    %cst_58 = arith.constant 5.000000e-01 : f32
    %137 = vector.broadcast %cst_58 : f32 to vector<16x128xf32>
    %138 = arith.mulf %137, %136 : vector<16x128xf32>
    %cst_59 = arith.constant 5.000000e-01 : f32
    %139 = vector.broadcast %cst_59 : f32 to vector<16x128xf32>
    %140 = arith.addf %138, %139 : vector<16x128xf32>
    %cst_60 = arith.constant 5.000000e-01 : f32
    %141 = vector.broadcast %cst_60 : f32 to vector<16x128xf32>
    %142 = arith.mulf %141, %140 : vector<16x128xf32>
    %143 = math.tanh %142 : vector<16x128xf32>
    %cst_61 = arith.constant 5.000000e-01 : f32
    %144 = vector.broadcast %cst_61 : f32 to vector<16x128xf32>
    %145 = arith.mulf %144, %143 : vector<16x128xf32>
    %cst_62 = arith.constant 5.000000e-01 : f32
    %146 = vector.broadcast %cst_62 : f32 to vector<16x128xf32>
    %147 = arith.addf %145, %146 : vector<16x128xf32>
    %cst_63 = arith.constant 5.000000e-01 : f32
    %148 = vector.broadcast %cst_63 : f32 to vector<16x128xf32>
    %149 = arith.mulf %148, %147 : vector<16x128xf32>
    %150 = math.tanh %149 : vector<16x128xf32>
    %cst_64 = arith.constant 5.000000e-01 : f32
    %151 = vector.broadcast %cst_64 : f32 to vector<16x128xf32>
    %152 = arith.mulf %151, %150 : vector<16x128xf32>
    %cst_65 = arith.constant 5.000000e-01 : f32
    %153 = vector.broadcast %cst_65 : f32 to vector<16x128xf32>
    %154 = arith.addf %152, %153 : vector<16x128xf32>
    %cst_66 = arith.constant 5.000000e-01 : f32
    %155 = vector.broadcast %cst_66 : f32 to vector<16x128xf32>
    %156 = arith.mulf %155, %154 : vector<16x128xf32>
    %157 = math.tanh %156 : vector<16x128xf32>
    %cst_67 = arith.constant 5.000000e-01 : f32
    %158 = vector.broadcast %cst_67 : f32 to vector<16x128xf32>
    %159 = arith.mulf %158, %157 : vector<16x128xf32>
    %cst_68 = arith.constant 5.000000e-01 : f32
    %160 = vector.broadcast %cst_68 : f32 to vector<16x128xf32>
    %161 = arith.addf %159, %160 : vector<16x128xf32>
    %cst_69 = arith.constant 5.000000e-01 : f32
    %162 = vector.broadcast %cst_69 : f32 to vector<16x128xf32>
    %163 = arith.mulf %162, %161 : vector<16x128xf32>
    %164 = math.tanh %163 : vector<16x128xf32>
    %cst_70 = arith.constant 5.000000e-01 : f32
    %165 = vector.broadcast %cst_70 : f32 to vector<16x128xf32>
    %166 = arith.mulf %165, %164 : vector<16x128xf32>
    %cst_71 = arith.constant 5.000000e-01 : f32
    %167 = vector.broadcast %cst_71 : f32 to vector<16x128xf32>
    %168 = arith.addf %166, %167 : vector<16x128xf32>
    %cst_72 = arith.constant 5.000000e-01 : f32
    %169 = vector.broadcast %cst_72 : f32 to vector<16x128xf32>
    %170 = arith.mulf %169, %168 : vector<16x128xf32>
    %171 = math.tanh %170 : vector<16x128xf32>
    %cst_73 = arith.constant 5.000000e-01 : f32
    %172 = vector.broadcast %cst_73 : f32 to vector<16x128xf32>
    %173 = arith.mulf %172, %171 : vector<16x128xf32>
    %cst_74 = arith.constant 5.000000e-01 : f32
    %174 = vector.broadcast %cst_74 : f32 to vector<16x128xf32>
    %175 = arith.addf %173, %174 : vector<16x128xf32>
    %cst_75 = arith.constant 5.000000e-01 : f32
    %176 = vector.broadcast %cst_75 : f32 to vector<16x128xf32>
    %177 = arith.mulf %176, %175 : vector<16x128xf32>
    %178 = math.tanh %177 : vector<16x128xf32>
    %cst_76 = arith.constant 5.000000e-01 : f32
    %179 = vector.broadcast %cst_76 : f32 to vector<16x128xf32>
    %180 = arith.mulf %179, %178 : vector<16x128xf32>
    %cst_77 = arith.constant 5.000000e-01 : f32
    %181 = vector.broadcast %cst_77 : f32 to vector<16x128xf32>
    %182 = arith.addf %180, %181 : vector<16x128xf32>
    %cst_78 = arith.constant 5.000000e-01 : f32
    %183 = vector.broadcast %cst_78 : f32 to vector<16x128xf32>
    %184 = arith.mulf %183, %182 : vector<16x128xf32>
    %185 = math.tanh %184 : vector<16x128xf32>
    %cst_79 = arith.constant 5.000000e-01 : f32
    %186 = vector.broadcast %cst_79 : f32 to vector<16x128xf32>
    %187 = arith.mulf %186, %185 : vector<16x128xf32>
    %cst_80 = arith.constant 5.000000e-01 : f32
    %188 = vector.broadcast %cst_80 : f32 to vector<16x128xf32>
    %189 = arith.addf %187, %188 : vector<16x128xf32>
    %cst_81 = arith.constant 5.000000e-01 : f32
    %190 = vector.broadcast %cst_81 : f32 to vector<16x128xf32>
    %191 = arith.mulf %190, %189 : vector<16x128xf32>
    %192 = math.tanh %191 : vector<16x128xf32>
    %cst_82 = arith.constant 5.000000e-01 : f32
    %193 = vector.broadcast %cst_82 : f32 to vector<16x128xf32>
    %194 = arith.mulf %193, %192 : vector<16x128xf32>
    %cst_83 = arith.constant 5.000000e-01 : f32
    %195 = vector.broadcast %cst_83 : f32 to vector<16x128xf32>
    %196 = arith.addf %194, %195 : vector<16x128xf32>
    %cst_84 = arith.constant 5.000000e-01 : f32
    %197 = vector.broadcast %cst_84 : f32 to vector<16x128xf32>
    %198 = arith.mulf %197, %196 : vector<16x128xf32>
    %199 = math.tanh %198 : vector<16x128xf32>
    %cst_85 = arith.constant 5.000000e-01 : f32
    %200 = vector.broadcast %cst_85 : f32 to vector<16x128xf32>
    %201 = arith.mulf %200, %199 : vector<16x128xf32>
    %cst_86 = arith.constant 5.000000e-01 : f32
    %202 = vector.broadcast %cst_86 : f32 to vector<16x128xf32>
    %203 = arith.addf %201, %202 : vector<16x128xf32>
    %cst_87 = arith.constant 5.000000e-01 : f32
    %204 = vector.broadcast %cst_87 : f32 to vector<16x128xf32>
    %205 = arith.mulf %204, %203 : vector<16x128xf32>
    %206 = math.tanh %205 : vector<16x128xf32>
    %cst_88 = arith.constant 5.000000e-01 : f32
    %207 = vector.broadcast %cst_88 : f32 to vector<16x128xf32>
    %208 = arith.mulf %207, %206 : vector<16x128xf32>
    %cst_89 = arith.constant 5.000000e-01 : f32
    %209 = vector.broadcast %cst_89 : f32 to vector<16x128xf32>
    %210 = arith.addf %208, %209 : vector<16x128xf32>
    %cst_90 = arith.constant 5.000000e-01 : f32
    %211 = vector.broadcast %cst_90 : f32 to vector<16x128xf32>
    %212 = arith.mulf %211, %210 : vector<16x128xf32>
    %213 = math.tanh %212 : vector<16x128xf32>
    %cst_91 = arith.constant 5.000000e-01 : f32
    %214 = vector.broadcast %cst_91 : f32 to vector<16x128xf32>
    %215 = arith.mulf %214, %213 : vector<16x128xf32>
    %cst_92 = arith.constant 5.000000e-01 : f32
    %216 = vector.broadcast %cst_92 : f32 to vector<16x128xf32>
    %217 = arith.addf %215, %216 : vector<16x128xf32>
    %cst_93 = arith.constant 5.000000e-01 : f32
    %218 = vector.broadcast %cst_93 : f32 to vector<16x128xf32>
    %219 = arith.mulf %218, %217 : vector<16x128xf32>
    %220 = math.tanh %219 : vector<16x128xf32>
    %cst_94 = arith.constant 5.000000e-01 : f32
    %221 = vector.broadcast %cst_94 : f32 to vector<16x128xf32>
    %222 = arith.mulf %221, %220 : vector<16x128xf32>
    %cst_95 = arith.constant 5.000000e-01 : f32
    %223 = vector.broadcast %cst_95 : f32 to vector<16x128xf32>
    %224 = arith.addf %222, %223 : vector<16x128xf32>
    %cst_96 = arith.constant 5.000000e-01 : f32
    %225 = vector.broadcast %cst_96 : f32 to vector<16x128xf32>
    %226 = arith.mulf %225, %224 : vector<16x128xf32>
    %227 = math.tanh %226 : vector<16x128xf32>
    %cst_97 = arith.constant 5.000000e-01 : f32
    %228 = vector.broadcast %cst_97 : f32 to vector<16x128xf32>
    %229 = arith.mulf %228, %227 : vector<16x128xf32>
    %cst_98 = arith.constant 5.000000e-01 : f32
    %230 = vector.broadcast %cst_98 : f32 to vector<16x128xf32>
    %231 = arith.addf %229, %230 : vector<16x128xf32>
    %cst_99 = arith.constant 5.000000e-01 : f32
    %232 = vector.broadcast %cst_99 : f32 to vector<16x128xf32>
    %233 = arith.mulf %232, %231 : vector<16x128xf32>
    %234 = math.tanh %233 : vector<16x128xf32>
    %cst_100 = arith.constant 5.000000e-01 : f32
    %235 = vector.broadcast %cst_100 : f32 to vector<16x128xf32>
    %236 = arith.mulf %235, %234 : vector<16x128xf32>
    %cst_101 = arith.constant 5.000000e-01 : f32
    %237 = vector.broadcast %cst_101 : f32 to vector<16x128xf32>
    %238 = arith.addf %236, %237 : vector<16x128xf32>
    %cst_102 = arith.constant 5.000000e-01 : f32
    %239 = vector.broadcast %cst_102 : f32 to vector<16x128xf32>
    %240 = arith.mulf %239, %238 : vector<16x128xf32>
    %241 = math.tanh %240 : vector<16x128xf32>
    %cst_103 = arith.constant 5.000000e-01 : f32
    %242 = vector.broadcast %cst_103 : f32 to vector<16x128xf32>
    %243 = arith.mulf %242, %241 : vector<16x128xf32>
    %cst_104 = arith.constant 5.000000e-01 : f32
    %244 = vector.broadcast %cst_104 : f32 to vector<16x128xf32>
    %245 = arith.addf %243, %244 : vector<16x128xf32>
    %cst_105 = arith.constant 5.000000e-01 : f32
    %246 = vector.broadcast %cst_105 : f32 to vector<16x128xf32>
    %247 = arith.mulf %246, %245 : vector<16x128xf32>
    %248 = math.tanh %247 : vector<16x128xf32>
    %cst_106 = arith.constant 5.000000e-01 : f32
    %249 = vector.broadcast %cst_106 : f32 to vector<16x128xf32>
    %250 = arith.mulf %249, %248 : vector<16x128xf32>
    %cst_107 = arith.constant 5.000000e-01 : f32
    %251 = vector.broadcast %cst_107 : f32 to vector<16x128xf32>
    %252 = arith.addf %250, %251 : vector<16x128xf32>
    %cst_108 = arith.constant 5.000000e-01 : f32
    %253 = vector.broadcast %cst_108 : f32 to vector<16x128xf32>
    %254 = arith.mulf %253, %252 : vector<16x128xf32>
    %255 = math.tanh %254 : vector<16x128xf32>
    %cst_109 = arith.constant 5.000000e-01 : f32
    %256 = vector.broadcast %cst_109 : f32 to vector<16x128xf32>
    %257 = arith.mulf %256, %255 : vector<16x128xf32>
    %cst_110 = arith.constant 5.000000e-01 : f32
    %258 = vector.broadcast %cst_110 : f32 to vector<16x128xf32>
    %259 = arith.addf %257, %258 : vector<16x128xf32>
    %cst_111 = arith.constant 5.000000e-01 : f32
    %260 = vector.broadcast %cst_111 : f32 to vector<16x128xf32>
    %261 = arith.mulf %260, %259 : vector<16x128xf32>
    %262 = math.tanh %261 : vector<16x128xf32>
    %cst_112 = arith.constant 5.000000e-01 : f32
    %263 = vector.broadcast %cst_112 : f32 to vector<16x128xf32>
    %264 = arith.mulf %263, %262 : vector<16x128xf32>
    %cst_113 = arith.constant 5.000000e-01 : f32
    %265 = vector.broadcast %cst_113 : f32 to vector<16x128xf32>
    %266 = arith.addf %264, %265 : vector<16x128xf32>
    %cst_114 = arith.constant 5.000000e-01 : f32
    %267 = vector.broadcast %cst_114 : f32 to vector<16x128xf32>
    %268 = arith.mulf %267, %266 : vector<16x128xf32>
    %269 = math.tanh %268 : vector<16x128xf32>
    %cst_115 = arith.constant 5.000000e-01 : f32
    %270 = vector.broadcast %cst_115 : f32 to vector<16x128xf32>
    %271 = arith.mulf %270, %269 : vector<16x128xf32>
    %cst_116 = arith.constant 5.000000e-01 : f32
    %272 = vector.broadcast %cst_116 : f32 to vector<16x128xf32>
    %273 = arith.addf %271, %272 : vector<16x128xf32>
    %cst_117 = arith.constant 5.000000e-01 : f32
    %274 = vector.broadcast %cst_117 : f32 to vector<16x128xf32>
    %275 = arith.mulf %274, %273 : vector<16x128xf32>
    %276 = math.tanh %275 : vector<16x128xf32>
    %cst_118 = arith.constant 5.000000e-01 : f32
    %277 = vector.broadcast %cst_118 : f32 to vector<16x128xf32>
    %278 = arith.mulf %277, %276 : vector<16x128xf32>
    %cst_119 = arith.constant 5.000000e-01 : f32
    %279 = vector.broadcast %cst_119 : f32 to vector<16x128xf32>
    %280 = arith.addf %278, %279 : vector<16x128xf32>
    %cst_120 = arith.constant 5.000000e-01 : f32
    %281 = vector.broadcast %cst_120 : f32 to vector<16x128xf32>
    %282 = arith.mulf %281, %280 : vector<16x128xf32>
    %283 = math.tanh %282 : vector<16x128xf32>
    %cst_121 = arith.constant 5.000000e-01 : f32
    %284 = vector.broadcast %cst_121 : f32 to vector<16x128xf32>
    %285 = arith.mulf %284, %283 : vector<16x128xf32>
    %cst_122 = arith.constant 5.000000e-01 : f32
    %286 = vector.broadcast %cst_122 : f32 to vector<16x128xf32>
    %287 = arith.addf %285, %286 : vector<16x128xf32>
    %cst_123 = arith.constant 5.000000e-01 : f32
    %288 = vector.broadcast %cst_123 : f32 to vector<16x128xf32>
    %289 = arith.mulf %288, %287 : vector<16x128xf32>
    %290 = math.tanh %289 : vector<16x128xf32>
    %cst_124 = arith.constant 5.000000e-01 : f32
    %291 = vector.broadcast %cst_124 : f32 to vector<16x128xf32>
    %292 = arith.mulf %291, %290 : vector<16x128xf32>
    %cst_125 = arith.constant 5.000000e-01 : f32
    %293 = vector.broadcast %cst_125 : f32 to vector<16x128xf32>
    %294 = arith.addf %292, %293 : vector<16x128xf32>
    %cst_126 = arith.constant 5.000000e-01 : f32
    %295 = vector.broadcast %cst_126 : f32 to vector<16x128xf32>
    %296 = arith.mulf %295, %294 : vector<16x128xf32>
    %297 = math.tanh %296 : vector<16x128xf32>
    %cst_127 = arith.constant 5.000000e-01 : f32
    %298 = vector.broadcast %cst_127 : f32 to vector<16x128xf32>
    %299 = arith.mulf %298, %297 : vector<16x128xf32>
    %cst_128 = arith.constant 5.000000e-01 : f32
    %300 = vector.broadcast %cst_128 : f32 to vector<16x128xf32>
    %301 = arith.addf %299, %300 : vector<16x128xf32>
    %cst_129 = arith.constant 5.000000e-01 : f32
    %302 = vector.broadcast %cst_129 : f32 to vector<16x128xf32>
    %303 = arith.mulf %302, %301 : vector<16x128xf32>
    %304 = math.tanh %303 : vector<16x128xf32>
    %cst_130 = arith.constant 5.000000e-01 : f32
    %305 = vector.broadcast %cst_130 : f32 to vector<16x128xf32>
    %306 = arith.mulf %305, %304 : vector<16x128xf32>
    %cst_131 = arith.constant 5.000000e-01 : f32
    %307 = vector.broadcast %cst_131 : f32 to vector<16x128xf32>
    %308 = arith.addf %306, %307 : vector<16x128xf32>
    %cst_132 = arith.constant 5.000000e-01 : f32
    %309 = vector.broadcast %cst_132 : f32 to vector<16x128xf32>
    %310 = arith.mulf %309, %308 : vector<16x128xf32>
    %311 = math.tanh %310 : vector<16x128xf32>
    %cst_133 = arith.constant 5.000000e-01 : f32
    %312 = vector.broadcast %cst_133 : f32 to vector<16x128xf32>
    %313 = arith.mulf %312, %311 : vector<16x128xf32>
    %cst_134 = arith.constant 5.000000e-01 : f32
    %314 = vector.broadcast %cst_134 : f32 to vector<16x128xf32>
    %315 = arith.addf %313, %314 : vector<16x128xf32>
    %cst_135 = arith.constant 5.000000e-01 : f32
    %316 = vector.broadcast %cst_135 : f32 to vector<16x128xf32>
    %317 = arith.mulf %316, %315 : vector<16x128xf32>
    %318 = math.tanh %317 : vector<16x128xf32>
    %cst_136 = arith.constant 5.000000e-01 : f32
    %319 = vector.broadcast %cst_136 : f32 to vector<16x128xf32>
    %320 = arith.mulf %319, %318 : vector<16x128xf32>
    %cst_137 = arith.constant 5.000000e-01 : f32
    %321 = vector.broadcast %cst_137 : f32 to vector<16x128xf32>
    %322 = arith.addf %320, %321 : vector<16x128xf32>
    %cst_138 = arith.constant 5.000000e-01 : f32
    %323 = vector.broadcast %cst_138 : f32 to vector<16x128xf32>
    %324 = arith.mulf %323, %322 : vector<16x128xf32>
    %325 = math.tanh %324 : vector<16x128xf32>
    %cst_139 = arith.constant 5.000000e-01 : f32
    %326 = vector.broadcast %cst_139 : f32 to vector<16x128xf32>
    %327 = arith.mulf %326, %325 : vector<16x128xf32>
    %cst_140 = arith.constant 5.000000e-01 : f32
    %328 = vector.broadcast %cst_140 : f32 to vector<16x128xf32>
    %329 = arith.addf %327, %328 : vector<16x128xf32>
    %cst_141 = arith.constant 5.000000e-01 : f32
    %330 = vector.broadcast %cst_141 : f32 to vector<16x128xf32>
    %331 = arith.mulf %330, %329 : vector<16x128xf32>
    %332 = math.tanh %331 : vector<16x128xf32>
    %cst_142 = arith.constant 5.000000e-01 : f32
    %333 = vector.broadcast %cst_142 : f32 to vector<16x128xf32>
    %334 = arith.mulf %333, %332 : vector<16x128xf32>
    %cst_143 = arith.constant 5.000000e-01 : f32
    %335 = vector.broadcast %cst_143 : f32 to vector<16x128xf32>
    %336 = arith.addf %334, %335 : vector<16x128xf32>
    %cst_144 = arith.constant 5.000000e-01 : f32
    %337 = vector.broadcast %cst_144 : f32 to vector<16x128xf32>
    %338 = arith.mulf %337, %336 : vector<16x128xf32>
    %339 = math.tanh %338 : vector<16x128xf32>
    %cst_145 = arith.constant 5.000000e-01 : f32
    %340 = vector.broadcast %cst_145 : f32 to vector<16x128xf32>
    %341 = arith.mulf %340, %339 : vector<16x128xf32>
    %cst_146 = arith.constant 5.000000e-01 : f32
    %342 = vector.broadcast %cst_146 : f32 to vector<16x128xf32>
    %343 = arith.addf %341, %342 : vector<16x128xf32>
    %cst_147 = arith.constant 5.000000e-01 : f32
    %344 = vector.broadcast %cst_147 : f32 to vector<16x128xf32>
    %345 = arith.mulf %344, %343 : vector<16x128xf32>
    %346 = math.tanh %345 : vector<16x128xf32>
    %cst_148 = arith.constant 5.000000e-01 : f32
    %347 = vector.broadcast %cst_148 : f32 to vector<16x128xf32>
    %348 = arith.mulf %347, %346 : vector<16x128xf32>
    %cst_149 = arith.constant 5.000000e-01 : f32
    %349 = vector.broadcast %cst_149 : f32 to vector<16x128xf32>
    %350 = arith.addf %348, %349 : vector<16x128xf32>
    %cst_150 = arith.constant 5.000000e-01 : f32
    %351 = vector.broadcast %cst_150 : f32 to vector<16x128xf32>
    %352 = arith.mulf %351, %350 : vector<16x128xf32>
    %353 = math.tanh %352 : vector<16x128xf32>
    %cst_151 = arith.constant 5.000000e-01 : f32
    %354 = vector.broadcast %cst_151 : f32 to vector<16x128xf32>
    %355 = arith.mulf %354, %353 : vector<16x128xf32>
    %cst_152 = arith.constant 5.000000e-01 : f32
    %356 = vector.broadcast %cst_152 : f32 to vector<16x128xf32>
    %357 = arith.addf %355, %356 : vector<16x128xf32>
    %cst_153 = arith.constant 5.000000e-01 : f32
    %358 = vector.broadcast %cst_153 : f32 to vector<16x128xf32>
    %359 = arith.mulf %358, %357 : vector<16x128xf32>
    %360 = math.tanh %359 : vector<16x128xf32>
    %cst_154 = arith.constant 5.000000e-01 : f32
    %361 = vector.broadcast %cst_154 : f32 to vector<16x128xf32>
    %362 = arith.mulf %361, %360 : vector<16x128xf32>
    %cst_155 = arith.constant 5.000000e-01 : f32
    %363 = vector.broadcast %cst_155 : f32 to vector<16x128xf32>
    %364 = arith.addf %362, %363 : vector<16x128xf32>
    %cst_156 = arith.constant 5.000000e-01 : f32
    %365 = vector.broadcast %cst_156 : f32 to vector<16x128xf32>
    %366 = arith.mulf %365, %364 : vector<16x128xf32>
    %367 = math.tanh %366 : vector<16x128xf32>
    %cst_157 = arith.constant 5.000000e-01 : f32
    %368 = vector.broadcast %cst_157 : f32 to vector<16x128xf32>
    %369 = arith.mulf %368, %367 : vector<16x128xf32>
    %cst_158 = arith.constant 5.000000e-01 : f32
    %370 = vector.broadcast %cst_158 : f32 to vector<16x128xf32>
    %371 = arith.addf %369, %370 : vector<16x128xf32>
    %cst_159 = arith.constant 5.000000e-01 : f32
    %372 = vector.broadcast %cst_159 : f32 to vector<16x128xf32>
    %373 = arith.mulf %372, %371 : vector<16x128xf32>
    %374 = math.tanh %373 : vector<16x128xf32>
    %cst_160 = arith.constant 5.000000e-01 : f32
    %375 = vector.broadcast %cst_160 : f32 to vector<16x128xf32>
    %376 = arith.mulf %375, %374 : vector<16x128xf32>
    %cst_161 = arith.constant 5.000000e-01 : f32
    %377 = vector.broadcast %cst_161 : f32 to vector<16x128xf32>
    %378 = arith.addf %376, %377 : vector<16x128xf32>
    %cst_162 = arith.constant 5.000000e-01 : f32
    %379 = vector.broadcast %cst_162 : f32 to vector<16x128xf32>
    %380 = arith.mulf %379, %378 : vector<16x128xf32>
    %381 = math.tanh %380 : vector<16x128xf32>
    %cst_163 = arith.constant 5.000000e-01 : f32
    %382 = vector.broadcast %cst_163 : f32 to vector<16x128xf32>
    %383 = arith.mulf %382, %381 : vector<16x128xf32>
    %cst_164 = arith.constant 5.000000e-01 : f32
    %384 = vector.broadcast %cst_164 : f32 to vector<16x128xf32>
    %385 = arith.addf %383, %384 : vector<16x128xf32>
    %cst_165 = arith.constant 5.000000e-01 : f32
    %386 = vector.broadcast %cst_165 : f32 to vector<16x128xf32>
    %387 = arith.mulf %386, %385 : vector<16x128xf32>
    %388 = math.tanh %387 : vector<16x128xf32>
    %cst_166 = arith.constant 5.000000e-01 : f32
    %389 = vector.broadcast %cst_166 : f32 to vector<16x128xf32>
    %390 = arith.mulf %389, %388 : vector<16x128xf32>
    %cst_167 = arith.constant 5.000000e-01 : f32
    %391 = vector.broadcast %cst_167 : f32 to vector<16x128xf32>
    %392 = arith.addf %390, %391 : vector<16x128xf32>
    %cst_168 = arith.constant 5.000000e-01 : f32
    %393 = vector.broadcast %cst_168 : f32 to vector<16x128xf32>
    %394 = arith.mulf %393, %392 : vector<16x128xf32>
    %395 = math.tanh %394 : vector<16x128xf32>
    %cst_169 = arith.constant 5.000000e-01 : f32
    %396 = vector.broadcast %cst_169 : f32 to vector<16x128xf32>
    %397 = arith.mulf %396, %395 : vector<16x128xf32>
    %cst_170 = arith.constant 5.000000e-01 : f32
    %398 = vector.broadcast %cst_170 : f32 to vector<16x128xf32>
    %399 = arith.addf %397, %398 : vector<16x128xf32>
    %cst_171 = arith.constant 5.000000e-01 : f32
    %400 = vector.broadcast %cst_171 : f32 to vector<16x128xf32>
    %401 = arith.mulf %400, %399 : vector<16x128xf32>
    %402 = math.tanh %401 : vector<16x128xf32>
    %cst_172 = arith.constant 5.000000e-01 : f32
    %403 = vector.broadcast %cst_172 : f32 to vector<16x128xf32>
    %404 = arith.mulf %403, %402 : vector<16x128xf32>
    %cst_173 = arith.constant 5.000000e-01 : f32
    %405 = vector.broadcast %cst_173 : f32 to vector<16x128xf32>
    %406 = arith.addf %404, %405 : vector<16x128xf32>
    %cst_174 = arith.constant 5.000000e-01 : f32
    %407 = vector.broadcast %cst_174 : f32 to vector<16x128xf32>
    %408 = arith.mulf %407, %406 : vector<16x128xf32>
    %409 = math.tanh %408 : vector<16x128xf32>
    %cst_175 = arith.constant 5.000000e-01 : f32
    %410 = vector.broadcast %cst_175 : f32 to vector<16x128xf32>
    %411 = arith.mulf %410, %409 : vector<16x128xf32>
    %cst_176 = arith.constant 5.000000e-01 : f32
    %412 = vector.broadcast %cst_176 : f32 to vector<16x128xf32>
    %413 = arith.addf %411, %412 : vector<16x128xf32>
    %cst_177 = arith.constant 5.000000e-01 : f32
    %414 = vector.broadcast %cst_177 : f32 to vector<16x128xf32>
    %415 = arith.mulf %414, %413 : vector<16x128xf32>
    %416 = math.tanh %415 : vector<16x128xf32>
    %cst_178 = arith.constant 5.000000e-01 : f32
    %417 = vector.broadcast %cst_178 : f32 to vector<16x128xf32>
    %418 = arith.mulf %417, %416 : vector<16x128xf32>
    %cst_179 = arith.constant 5.000000e-01 : f32
    %419 = vector.broadcast %cst_179 : f32 to vector<16x128xf32>
    %420 = arith.addf %418, %419 : vector<16x128xf32>
    %cst_180 = arith.constant 5.000000e-01 : f32
    %421 = vector.broadcast %cst_180 : f32 to vector<16x128xf32>
    %422 = arith.mulf %421, %420 : vector<16x128xf32>
    %423 = math.tanh %422 : vector<16x128xf32>
    %cst_181 = arith.constant 5.000000e-01 : f32
    %424 = vector.broadcast %cst_181 : f32 to vector<16x128xf32>
    %425 = arith.mulf %424, %423 : vector<16x128xf32>
    %cst_182 = arith.constant 5.000000e-01 : f32
    %426 = vector.broadcast %cst_182 : f32 to vector<16x128xf32>
    %427 = arith.addf %425, %426 : vector<16x128xf32>
    %cst_183 = arith.constant 5.000000e-01 : f32
    %428 = vector.broadcast %cst_183 : f32 to vector<16x128xf32>
    %429 = arith.mulf %428, %427 : vector<16x128xf32>
    %430 = math.tanh %429 : vector<16x128xf32>
    %cst_184 = arith.constant 5.000000e-01 : f32
    %431 = vector.broadcast %cst_184 : f32 to vector<16x128xf32>
    %432 = arith.mulf %431, %430 : vector<16x128xf32>
    %cst_185 = arith.constant 5.000000e-01 : f32
    %433 = vector.broadcast %cst_185 : f32 to vector<16x128xf32>
    %434 = arith.addf %432, %433 : vector<16x128xf32>
    %cst_186 = arith.constant 5.000000e-01 : f32
    %435 = vector.broadcast %cst_186 : f32 to vector<16x128xf32>
    %436 = arith.mulf %435, %434 : vector<16x128xf32>
    %437 = math.tanh %436 : vector<16x128xf32>
    %cst_187 = arith.constant 5.000000e-01 : f32
    %438 = vector.broadcast %cst_187 : f32 to vector<16x128xf32>
    %439 = arith.mulf %438, %437 : vector<16x128xf32>
    %cst_188 = arith.constant 5.000000e-01 : f32
    %440 = vector.broadcast %cst_188 : f32 to vector<16x128xf32>
    %441 = arith.addf %439, %440 : vector<16x128xf32>
    %cst_189 = arith.constant 5.000000e-01 : f32
    %442 = vector.broadcast %cst_189 : f32 to vector<16x128xf32>
    %443 = arith.mulf %442, %441 : vector<16x128xf32>
    %444 = math.tanh %443 : vector<16x128xf32>
    %cst_190 = arith.constant 5.000000e-01 : f32
    %445 = vector.broadcast %cst_190 : f32 to vector<16x128xf32>
    %446 = arith.mulf %445, %444 : vector<16x128xf32>
    %cst_191 = arith.constant 5.000000e-01 : f32
    %447 = vector.broadcast %cst_191 : f32 to vector<16x128xf32>
    %448 = arith.addf %446, %447 : vector<16x128xf32>
    %c0_192 = arith.constant 0 : index
    %c0_193 = arith.constant 0 : index
    %449 = vector.load %arg1[%c0_192, %c0_193] : memref<16x128xf32, #tpu.memory_space<vmem>>, vector<16x128xf32>
    tpu.vector_store %arg1[%c0_192, %c0_193], %448 {strides = array<i32>} : memref<16x128xf32, #tpu.memory_space<vmem>>, vector<16x128xf32>,
    return
  }
}

</mosaic_0001>

<llo_original>
// kernel: repeated_sigmoid.1
$region0: #{repeated_sigmoid.1}
  #allocation0 [shape = 'u32[]', space=smem, size = 0x4, offset = 0x4, fixed_abs, tag = 'smem constant byte address 0x4 - core index']
  #allocation1 [shape = 'u32[144,128]{1,0:T(1,128)}', space=vmem, size = 0x12000, scoped, tag = 'internal scratch']
  %s0 = inlined_call_operand.vmem [shape: f32[16,128], index: 0, kind: input, shape index: {}, may-alias: {0,1}]
  %s1 = inlined_call_operand.vmem [shape: f32[16,128], index: 1, kind: output, shape index: {}, may-alias: {0,1}]
  %s2 = sld [smem:[#allocation0]]
  $region14: #{repeated_sigmoid.1} parent=0
    _
  %s4 = ssub.s32 1, %s2
  %s5 = scalar_select 0, %s4, %s2
  // Predicated region
  $region2: #{repeated_sigmoid.1} parent=0 // pred_check
    _
  $region3: #{repeated_sigmoid.1} parent=0 // pred_check_branch
    %7 = sbr.rel (0) target = $region5
  $region4: #{repeated_sigmoid.1} parent=0 // pred_region
    _
  $region5: #{repeated_sigmoid.1} parent=0 // pred_fallthru
    _
  %v8 = vld [vmem:[%s0] sm:$0xff]
  %v9 = vld [vmem:[%s0 + $0x8] sm:$0xff]
  %v10 = vmul.f32 %v8, 0.5
  %v11 = vmul.f32 %v9, 0.5
  %v12 = vtanh.pop %v10
  %v13 = vtanh.pop %v11
  %v14 = vmul.f32 %v12, 0.5
  %v15 = vmul.f32 %v13, 0.5
  %v16 = vadd.f32 %v14, 0.5
  %v17 = vadd.f32 %v15, 0.5
  %v18 = vmul.f32 %v16, 0.5
  %v19 = vmul.f32 %v17, 0.5
  %v20 = vtanh.pop %v18
  %v21 = vtanh.pop %v19
  %v22 = vmul.f32 %v20, 0.5
  %v23 = vmul.f32 %v21, 0.5
  %v24 = vadd.f32 %v22, 0.5
  %v25 = vadd.f32 %v23, 0.5
  %v26 = vmul.f32 %v24, 0.5
  %v27 = vmul.f32 %v25, 0.5
  %v28 = vtanh.pop %v26
  %v29 = vtanh.pop %v27
  %v30 = vmul.f32 %v28, 0.5
  %v31 = vmul.f32 %v29, 0.5
  %v32 = vadd.f32 %v30, 0.5
  %v33 = vadd.f32 %v31, 0.5
  %v34 = vmul.f32 %v32, 0.5
  %v35 = vmul.f32 %v33, 0.5
  %v36 = vtanh.pop %v34
  %v37 = vtanh.pop %v35
  %v38 = vmul.f32 %v36, 0.5
  %v39 = vmul.f32 %v37, 0.5
  %v40 = vadd.f32 %v38, 0.5
  %v41 = vadd.f32 %v39, 0.5
  %v42 = vmul.f32 %v40, 0.5
  %v43 = vmul.f32 %v41, 0.5
  %v44 = vtanh.pop %v42
  %v45 = vtanh.pop %v43
  %v46 = vmul.f32 %v44, 0.5
  %v47 = vmul.f32 %v45, 0.5
  %v48 = vadd.f32 %v46, 0.5
  %v49 = vadd.f32 %v47, 0.5
  %v50 = vmul.f32 %v48, 0.5
  %v51 = vmul.f32 %v49, 0.5
  %v52 = vtanh.pop %v50
  %v53 = vtanh.pop %v51
  %v54 = vmul.f32 %v52, 0.5
  %v55 = vmul.f32 %v53, 0.5
  %v56 = vadd.f32 %v54, 0.5
  %v57 = vadd.f32 %v55, 0.5
  %v58 = vmul.f32 %v56, 0.5
  %v59 = vmul.f32 %v57, 0.5
  %v60 = vtanh.pop %v58
  %v61 = vtanh.pop %v59
  %v62 = vmul.f32 %v60, 0.5
  %v63 = vmul.f32 %v61, 0.5
  %v64 = vadd.f32 %v62, 0.5
  %v65 = vadd.f32 %v63, 0.5
  %v66 = vmul.f32 %v64, 0.5
  %v67 = vmul.f32 %v65, 0.5
  %v68 = vtanh.pop %v66
  %v69 = vtanh.pop %v67
  %v70 = vmul.f32 %v68, 0.5
  %v71 = vmul.f32 %v69, 0.5
  %v72 = vadd.f32 %v70, 0.5
  %v73 = vadd.f32 %v71, 0.5
  %v74 = vmul.f32 %v72, 0.5
  %v75 = vmul.f32 %v73, 0.5
  %v76 = vtanh.pop %v74
  %v77 = vtanh.pop %v75
  %v78 = vmul.f32 %v76, 0.5
  %v79 = vmul.f32 %v77, 0.5
  %v80 = vadd.f32 %v78, 0.5
  %v81 = vadd.f32 %v79, 0.5
  %v82 = vmul.f32 %v80, 0.5
  %v83 = vmul.f32 %v81, 0.5
  %v84 = vtanh.pop %v82
  %v85 = vtanh.pop %v83
  %v86 = vmul.f32 %v84, 0.5
  %v87 = vmul.f32 %v85, 0.5
  %v88 = vadd.f32 %v86, 0.5
  %v89 = vadd.f32 %v87, 0.5
  %v90 = vmul.f32 %v88, 0.5
  %v91 = vmul.f32 %v89, 0.5
  %v92 = vtanh.pop %v90
  %v93 = vtanh.pop %v91
  %v94 = vmul.f32 %v92, 0.5
  %v95 = vmul.f32 %v93, 0.5
  %v96 = vadd.f32 %v94, 0.5
  %v97 = vadd.f32 %v95, 0.5
  %v98 = vmul.f32 %v96, 0.5
  %v99 = vmul.f32 %v97, 0.5
  %v100 = vtanh.pop %v98
  %v101 = vtanh.pop %v99
  %v102 = vmul.f32 %v100, 0.5
  %v103 = vmul.f32 %v101, 0.5
  %v104 = vadd.f32 %v102, 0.5
  %v105 = vadd.f32 %v103, 0.5
  %v106 = vmul.f32 %v104, 0.5
  %v107 = vmul.f32 %v105, 0.5
  %v108 = vtanh.pop %v106
  %v109 = vtanh.pop %v107
  %v110 = vmul.f32 %v108, 0.5
  %v111 = vmul.f32 %v109, 0.5
  %v112 = vadd.f32 %v110, 0.5
  %v113 = vadd.f32 %v111, 0.5
  %v114 = vmul.f32 %v112, 0.5
  %v115 = vmul.f32 %v113, 0.5
  %v116 = vtanh.pop %v114
  %v117 = vtanh.pop %v115
  %v118 = vmul.f32 %v116, 0.5
  %v119 = vmul.f32 %v117, 0.5
  %v120 = vadd.f32 %v118, 0.5
  %v121 = vadd.f32 %v119, 0.5
  %v122 = vmul.f32 %v120, 0.5
  %v123 = vmul.f32 %v121, 0.5
  %v124 = vtanh.pop %v122
  %v125 = vtanh.pop %v123
  %v126 = vmul.f32 %v124, 0.5
  %v127 = vmul.f32 %v125, 0.5
  %v128 = vadd.f32 %v126, 0.5
  %v129 = vadd.f32 %v127, 0.5
  %v130 = vmul.f32 %v128, 0.5
  %v131 = vmul.f32 %v129, 0.5
  %v132 = vtanh.pop %v130
  %v133 = vtanh.pop %v131
  %v134 = vmul.f32 %v132, 0.5
  %v135 = vmul.f32 %v133, 0.5
  %v136 = vadd.f32 %v134, 0.5
  %v137 = vadd.f32 %v135, 0.5
  %v138 = vmul.f32 %v136, 0.5
  %v139 = vmul.f32 %v137, 0.5
  %v140 = vtanh.pop %v138
  %v141 = vtanh.pop %v139
  %v142 = vmul.f32 %v140, 0.5
  %v143 = vmul.f32 %v141, 0.5
  %v144 = vadd.f32 %v142, 0.5
  %v145 = vadd.f32 %v143, 0.5
  %v146 = vmul.f32 %v144, 0.5
  %v147 = vmul.f32 %v145, 0.5
  %v148 = vtanh.pop %v146
  %v149 = vtanh.pop %v147
  %v150 = vmul.f32 %v148, 0.5
  %v151 = vmul.f32 %v149, 0.5
  %v152 = vadd.f32 %v150, 0.5
  %v153 = vadd.f32 %v151, 0.5
  %v154 = vmul.f32 %v152, 0.5
  %v155 = vmul.f32 %v153, 0.5
  %v156 = vtanh.pop %v154
  %v157 = vtanh.pop %v155
  %v158 = vmul.f32 %v156, 0.5
  %v159 = vmul.f32 %v157, 0.5
  %v160 = vadd.f32 %v158, 0.5
  %v161 = vadd.f32 %v159, 0.5
  %v162 = vmul.f32 %v160, 0.5
  %v163 = vmul.f32 %v161, 0.5
  %v164 = vtanh.pop %v162
  %v165 = vtanh.pop %v163
  %v166 = vmul.f32 %v164, 0.5
  %v167 = vmul.f32 %v165, 0.5
  %v168 = vadd.f32 %v166, 0.5
  %v169 = vadd.f32 %v167, 0.5
  %v170 = vmul.f32 %v168, 0.5
  %v171 = vmul.f32 %v169, 0.5
  %v172 = vtanh.pop %v170
  %v173 = vtanh.pop %v171
  %v174 = vmul.f32 %v172, 0.5
  %v175 = vmul.f32 %v173, 0.5
  %v176 = vadd.f32 %v174, 0.5
  %v177 = vadd.f32 %v175, 0.5
  %v178 = vmul.f32 %v176, 0.5
  %v179 = vmul.f32 %v177, 0.5
  %v180 = vtanh.pop %v178
  %v181 = vtanh.pop %v179
  %v182 = vmul.f32 %v180, 0.5
  %v183 = vmul.f32 %v181, 0.5
  %v184 = vadd.f32 %v182, 0.5
  %v185 = vadd.f32 %v183, 0.5
  %v186 = vmul.f32 %v184, 0.5
  %v187 = vmul.f32 %v185, 0.5
  %v188 = vtanh.pop %v186
  %v189 = vtanh.pop %v187
  %v190 = vmul.f32 %v188, 0.5
  %v191 = vmul.f32 %v189, 0.5
  %v192 = vadd.f32 %v190, 0.5
  %v193 = vadd.f32 %v191, 0.5
  %v194 = vmul.f32 %v192, 0.5
  %v195 = vmul.f32 %v193, 0.5
  %v196 = vtanh.pop %v194
  %v197 = vtanh.pop %v195
  %v198 = vmul.f32 %v196, 0.5
  %v199 = vmul.f32 %v197, 0.5
  %v200 = vadd.f32 %v198, 0.5
  %v201 = vadd.f32 %v199, 0.5
  %v202 = vmul.f32 %v200, 0.5
  %v203 = vmul.f32 %v201, 0.5
  %v204 = vtanh.pop %v202
  %v205 = vtanh.pop %v203
  %v206 = vmul.f32 %v204, 0.5
  %v207 = vmul.f32 %v205, 0.5
  %v208 = vadd.f32 %v206, 0.5
  %v209 = vadd.f32 %v207, 0.5
  %v210 = vmul.f32 %v208, 0.5
  %v211 = vmul.f32 %v209, 0.5
  %v212 = vtanh.pop %v210
  %v213 = vtanh.pop %v211
  %v214 = vmul.f32 %v212, 0.5
  %v215 = vmul.f32 %v213, 0.5
  %v216 = vadd.f32 %v214, 0.5
  %v217 = vadd.f32 %v215, 0.5
  %v218 = vmul.f32 %v216, 0.5
  %v219 = vmul.f32 %v217, 0.5
  %v220 = vtanh.pop %v218
  %v221 = vtanh.pop %v219
  %v222 = vmul.f32 %v220, 0.5
  %v223 = vmul.f32 %v221, 0.5
  %v224 = vadd.f32 %v222, 0.5
  %v225 = vadd.f32 %v223, 0.5
  %v226 = vmul.f32 %v224, 0.5
  %v227 = vmul.f32 %v225, 0.5
  %v228 = vtanh.pop %v226
  %v229 = vtanh.pop %v227
  %v230 = vmul.f32 %v228, 0.5
  %v231 = vmul.f32 %v229, 0.5
  %v232 = vadd.f32 %v230, 0.5
  %v233 = vadd.f32 %v231, 0.5
  %v234 = vmul.f32 %v232, 0.5
  %v235 = vmul.f32 %v233, 0.5
  %v236 = vtanh.pop %v234
  %v237 = vtanh.pop %v235
  %v238 = vmul.f32 %v236, 0.5
  %v239 = vmul.f32 %v237, 0.5
  %v240 = vadd.f32 %v238, 0.5
  %v241 = vadd.f32 %v239, 0.5
  %v242 = vmul.f32 %v240, 0.5
  %v243 = vmul.f32 %v241, 0.5
  %v244 = vtanh.pop %v242
  %v245 = vtanh.pop %v243
  %v246 = vmul.f32 %v244, 0.5
  %v247 = vmul.f32 %v245, 0.5
  %v248 = vadd.f32 %v246, 0.5
  %v249 = vadd.f32 %v247, 0.5
  %v250 = vmul.f32 %v248, 0.5
  %v251 = vmul.f32 %v249, 0.5
  %v252 = vtanh.pop %v250
  %v253 = vtanh.pop %v251
  %v254 = vmul.f32 %v252, 0.5
  %v255 = vmul.f32 %v253, 0.5
  %v256 = vadd.f32 %v254, 0.5
  %v257 = vadd.f32 %v255, 0.5
  %v258 = vmul.f32 %v256, 0.5
  %v259 = vmul.f32 %v257, 0.5
  %v260 = vtanh.pop %v258
  %v261 = vtanh.pop %v259
  %v262 = vmul.f32 %v260, 0.5
  %v263 = vmul.f32 %v261, 0.5
  %v264 = vadd.f32 %v262, 0.5
  %v265 = vadd.f32 %v263, 0.5
  %v266 = vmul.f32 %v264, 0.5
  %v267 = vmul.f32 %v265, 0.5
  %v268 = vtanh.pop %v266
  %v269 = vtanh.pop %v267
  %v270 = vmul.f32 %v268, 0.5
  %v271 = vmul.f32 %v269, 0.5
  %v272 = vadd.f32 %v270, 0.5
  %v273 = vadd.f32 %v271, 0.5
  %v274 = vmul.f32 %v272, 0.5
  %v275 = vmul.f32 %v273, 0.5
  %v276 = vtanh.pop %v274
  %v277 = vtanh.pop %v275
  %v278 = vmul.f32 %v276, 0.5
  %v279 = vmul.f32 %v277, 0.5
  %v280 = vadd.f32 %v278, 0.5
  %v281 = vadd.f32 %v279, 0.5
  %v282 = vmul.f32 %v280, 0.5
  %v283 = vmul.f32 %v281, 0.5
  %v284 = vtanh.pop %v282
  %v285 = vtanh.pop %v283
  %v286 = vmul.f32 %v284, 0.5
  %v287 = vmul.f32 %v285, 0.5
  %v288 = vadd.f32 %v286, 0.5
  %v289 = vadd.f32 %v287, 0.5
  %v290 = vmul.f32 %v288, 0.5
  %v291 = vmul.f32 %v289, 0.5
  %v292 = vtanh.pop %v290
  %v293 = vtanh.pop %v291
  %v294 = vmul.f32 %v292, 0.5
  %v295 = vmul.f32 %v293, 0.5
  %v296 = vadd.f32 %v294, 0.5
  %v297 = vadd.f32 %v295, 0.5
  %v298 = vmul.f32 %v296, 0.5
  %v299 = vmul.f32 %v297, 0.5
  %v300 = vtanh.pop %v298
  %v301 = vtanh.pop %v299
  %v302 = vmul.f32 %v300, 0.5
  %v303 = vmul.f32 %v301, 0.5
  %v304 = vadd.f32 %v302, 0.5
  %v305 = vadd.f32 %v303, 0.5
  %v306 = vmul.f32 %v304, 0.5
  %v307 = vmul.f32 %v305, 0.5
  %v308 = vtanh.pop %v306
  %v309 = vtanh.pop %v307
  %v310 = vmul.f32 %v308, 0.5
  %v311 = vmul.f32 %v309, 0.5
  %v312 = vadd.f32 %v310, 0.5
  %v313 = vadd.f32 %v311, 0.5
  %v314 = vmul.f32 %v312, 0.5
  %v315 = vmul.f32 %v313, 0.5
  %v316 = vtanh.pop %v314
  %v317 = vtanh.pop %v315
  %v318 = vmul.f32 %v316, 0.5
  %v319 = vmul.f32 %v317, 0.5
  %v320 = vadd.f32 %v318, 0.5
  %v321 = vadd.f32 %v319, 0.5
  %v322 = vmul.f32 %v320, 0.5
  %v323 = vmul.f32 %v321, 0.5
  %v324 = vtanh.pop %v322
  %v325 = vtanh.pop %v323
  %v326 = vmul.f32 %v324, 0.5
  %v327 = vmul.f32 %v325, 0.5
  %v328 = vadd.f32 %v326, 0.5
  %v329 = vadd.f32 %v327, 0.5
  %v330 = vmul.f32 %v328, 0.5
  %v331 = vmul.f32 %v329, 0.5
  %v332 = vtanh.pop %v330
  %v333 = vtanh.pop %v331
  %v334 = vmul.f32 %v332, 0.5
  %v335 = vmul.f32 %v333, 0.5
  %v336 = vadd.f32 %v334, 0.5
  %v337 = vadd.f32 %v335, 0.5
  %v338 = vmul.f32 %v336, 0.5
  %v339 = vmul.f32 %v337, 0.5
  %v340 = vtanh.pop %v338
  %v341 = vtanh.pop %v339
  %v342 = vmul.f32 %v340, 0.5
  %v343 = vmul.f32 %v341, 0.5
  %v344 = vadd.f32 %v342, 0.5
  %v345 = vadd.f32 %v343, 0.5
  %v346 = vmul.f32 %v344, 0.5
  %v347 = vmul.f32 %v345, 0.5
  %v348 = vtanh.pop %v346
  %v349 = vtanh.pop %v347
  %v350 = vmul.f32 %v348, 0.5
  %v351 = vmul.f32 %v349, 0.5
  %v352 = vadd.f32 %v350, 0.5
  %v353 = vadd.f32 %v351, 0.5
  %v354 = vmul.f32 %v352, 0.5
  %v355 = vmul.f32 %v353, 0.5
  %v356 = vtanh.pop %v354
  %v357 = vtanh.pop %v355
  %v358 = vmul.f32 %v356, 0.5
  %v359 = vmul.f32 %v357, 0.5
  %v360 = vadd.f32 %v358, 0.5
  %v361 = vadd.f32 %v359, 0.5
  %v362 = vmul.f32 %v360, 0.5
  %v363 = vmul.f32 %v361, 0.5
  %v364 = vtanh.pop %v362
  %v365 = vtanh.pop %v363
  %v366 = vmul.f32 %v364, 0.5
  %v367 = vmul.f32 %v365, 0.5
  %v368 = vadd.f32 %v366, 0.5
  %v369 = vadd.f32 %v367, 0.5
  %v370 = vmul.f32 %v368, 0.5
  %v371 = vmul.f32 %v369, 0.5
  %v372 = vtanh.pop %v370
  %v373 = vtanh.pop %v371
  %v374 = vmul.f32 %v372, 0.5
  %v375 = vmul.f32 %v373, 0.5
  %v376 = vadd.f32 %v374, 0.5
  %v377 = vadd.f32 %v375, 0.5
  %v378 = vmul.f32 %v376, 0.5
  %v379 = vmul.f32 %v377, 0.5
  %v380 = vtanh.pop %v378
  %v381 = vtanh.pop %v379
  %v382 = vmul.f32 %v380, 0.5
  %v383 = vmul.f32 %v381, 0.5
  %v384 = vadd.f32 %v382, 0.5
  %v385 = vadd.f32 %v383, 0.5
  %v386 = vmul.f32 %v384, 0.5
  %v387 = vmul.f32 %v385, 0.5
  %v388 = vtanh.pop %v386
  %v389 = vtanh.pop %v387
  %v390 = vmul.f32 %v388, 0.5
  %v391 = vmul.f32 %v389, 0.5
  %v392 = vadd.f32 %v390, 0.5
  %v393 = vadd.f32 %v391, 0.5
  %v394 = vmul.f32 %v392, 0.5
  %v395 = vmul.f32 %v393, 0.5
  %v396 = vtanh.pop %v394
  %v397 = vtanh.pop %v395
  %v398 = vmul.f32 %v396, 0.5
  %v399 = vmul.f32 %v397, 0.5
  %v400 = vadd.f32 %v398, 0.5
  %v401 = vadd.f32 %v399, 0.5
  %v402 = vmul.f32 %v400, 0.5
  %v403 = vmul.f32 %v401, 0.5
  %v404 = vtanh.pop %v402
  %v405 = vtanh.pop %v403
  %v406 = vmul.f32 %v404, 0.5
  %v407 = vmul.f32 %v405, 0.5
  %v408 = vadd.f32 %v406, 0.5
  %v409 = vadd.f32 %v407, 0.5
  %v410 = vmul.f32 %v408, 0.5
  %v411 = vmul.f32 %v409, 0.5
  %v412 = vtanh.pop %v410
  %v413 = vtanh.pop %v411
  %v414 = vmul.f32 %v412, 0.5
  %v415 = vmul.f32 %v413, 0.5
  %v416 = vadd.f32 %v414, 0.5
  %v417 = vadd.f32 %v415, 0.5
  %v418 = vmul.f32 %v416, 0.5
  %v419 = vmul.f32 %v417, 0.5
  %v420 = vtanh.pop %v418
  %v421 = vtanh.pop %v419
  %v422 = vmul.f32 %v420, 0.5
  %v423 = vmul.f32 %v421, 0.5
  %v424 = vadd.f32 %v422, 0.5
  %v425 = vadd.f32 %v423, 0.5
  %v426 = vmul.f32 %v424, 0.5
  %v427 = vmul.f32 %v425, 0.5
  %v428 = vtanh.pop %v426
  %v429 = vtanh.pop %v427
  %v430 = vmul.f32 %v428, 0.5
  %v431 = vmul.f32 %v429, 0.5
  %v432 = vadd.f32 %v430, 0.5
  %v433 = vadd.f32 %v431, 0.5
  %v434 = vmul.f32 %v432, 0.5
  %v435 = vmul.f32 %v433, 0.5
  %v436 = vtanh.pop %v434
  %v437 = vtanh.pop %v435
  %v438 = vmul.f32 %v436, 0.5
  %v439 = vmul.f32 %v437, 0.5
  %v440 = vadd.f32 %v438, 0.5
  %v441 = vadd.f32 %v439, 0.5
  %v442 = vmul.f32 %v440, 0.5
  %v443 = vmul.f32 %v441, 0.5
  %v444 = vtanh.pop %v442
  %v445 = vtanh.pop %v443
  %v446 = vmul.f32 %v444, 0.5
  %v447 = vmul.f32 %v445, 0.5
  %v448 = vadd.f32 %v446, 0.5
  %v449 = vadd.f32 %v447, 0.5
  %v450 = vmul.f32 %v448, 0.5
  %v451 = vmul.f32 %v449, 0.5
  %v452 = vtanh.pop %v450
  %v453 = vtanh.pop %v451
  %v454 = vmul.f32 %v452, 0.5
  %v455 = vmul.f32 %v453, 0.5
  %v456 = vadd.f32 %v454, 0.5
  %v457 = vadd.f32 %v455, 0.5
  %v458 = vmul.f32 %v456, 0.5
  %v459 = vmul.f32 %v457, 0.5
  %v460 = vtanh.pop %v458
  %v461 = vtanh.pop %v459
  %v462 = vmul.f32 %v460, 0.5
  %v463 = vmul.f32 %v461, 0.5
  %v464 = vadd.f32 %v462, 0.5
  %v465 = vadd.f32 %v463, 0.5
  %v466 = vmul.f32 %v464, 0.5
  %v467 = vmul.f32 %v465, 0.5
  %v468 = vtanh.pop %v466
  %v469 = vtanh.pop %v467
  %v470 = vmul.f32 %v468, 0.5
  %v471 = vmul.f32 %v469, 0.5
  %v472 = vadd.f32 %v470, 0.5
  %v473 = vadd.f32 %v471, 0.5
  %v474 = vmul.f32 %v472, 0.5
  %v475 = vmul.f32 %v473, 0.5
  %v476 = vtanh.pop %v474
  %v477 = vtanh.pop %v475
  %v478 = vmul.f32 %v476, 0.5
  %v479 = vmul.f32 %v477, 0.5
  %v480 = vadd.f32 %v478, 0.5
  %v481 = vadd.f32 %v479, 0.5
  %v482 = vmul.f32 %v480, 0.5
  %v483 = vmul.f32 %v481, 0.5
  %v484 = vtanh.pop %v482
  %v485 = vtanh.pop %v483
  %v486 = vmul.f32 %v484, 0.5
  %v487 = vmul.f32 %v485, 0.5
  %v488 = vadd.f32 %v486, 0.5
  %v489 = vadd.f32 %v487, 0.5
  %v490 = vmul.f32 %v488, 0.5
  %v491 = vmul.f32 %v489, 0.5
  %v492 = vtanh.pop %v490
  %v493 = vtanh.pop %v491
  %v494 = vmul.f32 %v492, 0.5
  %v495 = vmul.f32 %v493, 0.5
  %v496 = vadd.f32 %v494, 0.5
  %v497 = vadd.f32 %v495, 0.5
  %v498 = vmul.f32 %v496, 0.5
  %v499 = vmul.f32 %v497, 0.5
  %v500 = vtanh.pop %v498
  %v501 = vtanh.pop %v499
  %v502 = vmul.f32 %v500, 0.5
  %v503 = vmul.f32 %v501, 0.5
  %v504 = vadd.f32 %v502, 0.5
  %v505 = vadd.f32 %v503, 0.5
  %v506 = vmul.f32 %v504, 0.5
  %v507 = vmul.f32 %v505, 0.5
  %v508 = vtanh.pop %v506
  %v509 = vtanh.pop %v507
  %v510 = vmul.f32 %v508, 0.5
  %v511 = vmul.f32 %v509, 0.5
  %v512 = vadd.f32 %v510, 0.5
  %v513 = vadd.f32 %v511, 0.5
  %v514 = vmul.f32 %v512, 0.5
  %v515 = vmul.f32 %v513, 0.5
  %v516 = vtanh.pop %v514
  %v517 = vtanh.pop %v515
  %v518 = vmul.f32 %v516, 0.5
  %v519 = vmul.f32 %v517, 0.5
  %v520 = vadd.f32 %v518, 0.5
  %v521 = vadd.f32 %v519, 0.5
  %522 = vst [vmem:[%s1] sm:$0xff] %v520
  %523 = vst [vmem:[%s1 + $0x8] sm:$0xff] %v521
  // Predicated region
  $region6: #{repeated_sigmoid.1} parent=0 // pred_check
    _
  $region7: #{repeated_sigmoid.1} parent=0 // pred_check_branch
    %525 = sbr.rel (0) target = $region9
  $region8: #{repeated_sigmoid.1} parent=0 // pred_region
    _
  $region9: #{repeated_sigmoid.1} parent=0 // pred_fallthru
    _
  // Predicated region
  $region10: #{repeated_sigmoid.1} parent=0 // pred_check
    _
  $region11: #{repeated_sigmoid.1} parent=0 // pred_check_branch
    %527 = sbr.rel (0) target = $region13
  $region12: #{repeated_sigmoid.1} parent=0 // pred_region
    _
  $region13: #{repeated_sigmoid.1} parent=0 // pred_fallthru
    _

</llo_original>
